<compile_context>
chip_gen: v6e
topology: v6e:2x2x1
jax: 0.10.0
libtpu: 0.0.40
codegen_flags: <defaults>
</compile_context>

<pallas_src>
import functools

import jax
import jax.numpy as jnp
from jax.experimental import pallas as pl
from jax.experimental.pallas import tpu as pltpu


def _rup128(n):
    return ((n + 127) // 128) * 128


# ----------------------------- fused Pallas kernel -----------------------------

def fused_forward_kernel(xi_ref, xj_ref, bw_ref, w1_ref, w2_ref, w3_ref, sp_ref,
                         out_ref, *, batch, in8, mid2, feature_dim, class_num,
                         out_pad):
    n2b = 2 * batch

    # Stack the two views on the batch axis (shared weights) and cast to bf16
    # inside the kernel -> no wrapper-side concat/cast HBM round-trip.
    x = jnp.concatenate([xi_ref[...], xj_ref[...]], axis=0).astype(jnp.bfloat16)

    # Every tiny (1, N) f32 parameter lives in ONE stacked buffer (single DMA).
    bb = sp_ref[0:1, :in8]
    g1 = sp_ref[1:2, :mid2]
    be1 = sp_ref[2:3, :mid2]
    g2 = sp_ref[3:4, :mid2]
    be2 = sp_ref[4:5, :mid2]
    b3 = sp_ref[5:6, :out_pad]

    # Backbone stand-in: h = relu(x @ Wb + bb)   (bf16 MXU, f32 accumulation).
    h = jnp.maximum(
        jnp.dot(x, bw_ref[...], preferred_element_type=jnp.float32) + bb, 0.0)

    def bn_relu(a, g, b):
        # BatchNorm1d training-mode stats, computed PER VIEW: reshape
        # (2B, N) -> (2, B, N) and reduce over axis=1 (biased var, eps=1e-5).
        # No row slicing / concatenation.
        n = a.shape[-1]
        a3 = a.reshape(2, batch, n)
        mu = jnp.mean(a3, axis=1, keepdims=True)
        var = jnp.mean((a3 - mu) ** 2, axis=1, keepdims=True)
        an = ((a3 - mu) * jax.lax.rsqrt(var + 1e-5)).reshape(n2b, n)
        return jnp.maximum(an * g + b, 0.0)

    # Instance + cluster heads fused via block-diagonal weights; Linear biases
    # before training-mode BatchNorm are dropped (exactly canceled by the mean
    # subtraction).
    a = bn_relu(jnp.dot(h.astype(jnp.bfloat16), w1_ref[...],
                        preferred_element_type=jnp.float32), g1, be1)
    a = bn_relu(jnp.dot(a.astype(jnp.bfloat16), w2_ref[...],
                        preferred_element_type=jnp.float32), g2, be2)
    # w3 is zero-padded to a lane-dense 128-multiple width: the matmul output
    # IS the final (2B, out_pad) slab -> no concat / pad op in the epilogue.
    zc = jnp.dot(a.astype(jnp.bfloat16), w3_ref[...],
                 preferred_element_type=jnp.float32) + b3        # (2B, out_pad)

    col = jax.lax.broadcasted_iota(jnp.int32, (n2b, out_pad), 1)
    z_mask = col < feature_dim
    c_mask = (col >= feature_dim) & (col < feature_dim + class_num)

    # Instance head: F.normalize(p=2, dim=1, eps=1e-12)  (EUP rsqrt).
    sumsq = jnp.sum(jnp.where(z_mask, zc * zc, 0.0), axis=1, keepdims=True)
    inv_norm = jax.lax.rsqrt(jnp.maximum(sumsq, 1e-24))

    # Cluster head: softmax(dim=1); exact reciprocal so rows sum to 1.
    m = jnp.max(jnp.where(c_mask, zc, -jnp.inf), axis=1, keepdims=True)
    e = jnp.where(c_mask, jnp.exp(zc - m), 0.0)
    inv_den = pl.reciprocal(jnp.sum(e, axis=1, keepdims=True))

    # Single lane-dense unmasked store: [ z | c | 0-pad ].
    out_ref[...] = jnp.where(z_mask, zc * inv_norm, e * inv_den)


# ------------------------------ jitted wrapper ------------------------------

@functools.partial(jax.jit, static_argnames=("feature_dim", "class_num"))
def _forward_jit(packed, x_i, x_j, *, feature_dim, class_num):
    bw, w1p, w2p, w3p, sp = packed
    B = x_i.shape[0]
    in8 = bw.shape[1]
    mid2 = w1p.shape[1]
    out_pad = w3p.shape[1]
    out_width = feature_dim + class_num

    xi = x_i.reshape(B, -1)
    xj = x_j.reshape(B, -1)

    kern = functools.partial(
        fused_forward_kernel, batch=B, in8=in8, mid2=mid2,
        feature_dim=feature_dim, class_num=class_num, out_pad=out_pad)

    # Single grid point; all operands fit in VMEM at these shapes.
    out = pl.pallas_call(
        kern,
        out_shape=jax.ShapeDtypeStruct((2 * B, out_pad), jnp.float32),
        in_specs=[pl.BlockSpec(memory_space=pltpu.MemorySpace.VMEM)] * 7,
        out_specs=pl.BlockSpec(memory_space=pltpu.MemorySpace.VMEM),
    )(xi, xj, bw, w1p, w2p, w3p, sp)

    z_i = out[:B, :feature_dim]
    z_j = out[B:, :feature_dim]
    c_i = out[:B, feature_dim:out_width]
    c_j = out[B:, feature_dim:out_width]
    return z_i, z_j, c_i, c_j


class NetworkSTCCPallas:
    def __init__(self, key, in_features, stcc_dim, feature_dim, class_num):
        self.dim = stcc_dim
        self.feature_dim = feature_dim
        self.cluster_num = class_num
        mid = stcc_dim * 4
        in8 = stcc_dim * 8
        self.mid_dim = mid

        keys = iter(jax.random.split(key, 24))

        def lin_w(fan_in, fan_out):
            s = 1.0 / jnp.sqrt(jnp.float32(fan_in))
            return jax.random.uniform(next(keys), (fan_in, fan_out),
                                      jnp.float32, -s, s)

        def lin_b(fan_in, fan_out):
            s = 1.0 / jnp.sqrt(jnp.float32(fan_in))
            return jax.random.uniform(next(keys), (1, fan_out),
                                      jnp.float32, -s, s)

        def bn_params(n):
            # torch defaults are gamma=1 / beta=0; perturbed here so the packed
            # parameter path is genuinely exercised by the correctness check.
            g = 1.0 + 0.05 * jax.random.normal(next(keys), (1, n), jnp.float32)
            b = 0.05 * jax.random.normal(next(keys), (1, n), jnp.float32)
            return g, b

        # backbone stand-in (see TODO(synk) above)
        self.bw = lin_w(in_features, in8).astype(jnp.bfloat16)
        self.bb = lin_b(in_features, in8)

        # instance projector (Linear biases before BN omitted: exactly canceled)
        self.iw1 = lin_w(in8, mid)
        self.ig1, self.ibe1 = bn_params(mid)
        self.iw2 = lin_w(mid, mid)
        self.ig2, self.ibe2 = bn_params(mid)
        self.iw3 = lin_w(mid, feature_dim)
        self.ib3 = lin_b(mid, feature_dim)

        # cluster projector
        self.cw1 = lin_w(in8, mid)
        self.cg1, self.cbe1 = bn_params(mid)
        self.cw2 = lin_w(mid, mid)
        self.cg2, self.cbe2 = bn_params(mid)
        self.cw3 = lin_w(mid, class_num)
        self.cb3 = lin_b(mid, class_num)

        # ---- pack both heads into block-diagonal weights (kernel inputs) ----
        mid2 = 2 * mid
        out_width = feature_dim + class_num
        out_pad = _rup128(out_width)
        zmm = jnp.zeros((mid, mid), jnp.float32)

        w1p = jnp.concatenate([self.iw1, self.cw1], axis=1)
        w2p = jnp.concatenate(
            [jnp.concatenate([self.iw2, zmm], axis=1),
             jnp.concatenate([zmm, self.cw2], axis=1)], axis=0)
        w3p = jnp.concatenate(
            [jnp.concatenate(
                [self.iw3, jnp.zeros((mid, class_num), jnp.float32)], axis=1),
             jnp.concatenate(
                [jnp.zeros((mid, feature_dim), jnp.float32), self.cw3], axis=1)],
            axis=0)
        w3p = jnp.pad(w3p, ((0, 0), (0, out_pad - out_width)))

        # one stacked buffer for every tiny (1, N) f32 parameter
        P = max(128, _rup128(in8), _rup128(mid2), out_pad)
        sp = jnp.zeros((8, P), jnp.float32)
        sp = sp.at[0, :in8].set(self.bb[0])
        sp = sp.at[1, :mid2].set(jnp.concatenate([self.ig1, self.cg1], 1)[0])
        sp = sp.at[2, :mid2].set(jnp.concatenate([self.ibe1, self.cbe1], 1)[0])
        sp = sp.at[3, :mid2].set(jnp.concatenate([self.ig2, self.cg2], 1)[0])
        sp = sp.at[4, :mid2].set(jnp.concatenate([self.ibe2, self.cbe2], 1)[0])
        sp = sp.at[5, :out_width].set(
            jnp.concatenate([self.ib3, self.cb3], 1)[0])

        self.packed = (self.bw,
                       w1p.astype(jnp.bfloat16),
                       w2p.astype(jnp.bfloat16),
                       w3p.astype(jnp.bfloat16),
                       sp)

    def forward(self, x_i, x_j):
        return _forward_jit(self.packed, x_i, x_j,
                            feature_dim=self.feature_dim,
                            class_num=self.cluster_num)


# ---------------- reference (pure JAX, un-fused heads, same numerics) ----------------

def _ref_forward(net, x_i, x_j):
    def dot(a, b):
        return jnp.dot(a.astype(jnp.bfloat16), b.astype(jnp.bfloat16),
                       preferred_element_type=jnp.float32)

    def backbone(x):
        x2d = x.reshape(x.shape[0], -1)
        return jnp.maximum(dot(x2d, net.bw) + net.bb, 0.0)

    def bn_relu(x, g, b):
        mu = jnp.mean(x, 0, keepdims=True)
        var = jnp.mean((x - mu) ** 2, 0, keepdims=True)
        return jnp.maximum((x - mu) / jnp.sqrt(var + 1e-5) * g + b, 0.0)

    def proj(h, w1, g1, be1, w2, g2, be2, w3, b3, final):
        a = bn_relu(dot(h, w1), g1, be1)
        a = bn_relu(dot(a, w2), g2, be2)
        a = dot(a, w3) + b3
        if final == "l2norm":
            return a / jnp.maximum(
                jnp.linalg.norm(a, axis=1, keepdims=True), 1e-12)
        return jax.nn.softmax(a, axis=1)

    h_i, h_j = backbone(x_i), backbone(x_j)
    z_i = proj(h_i, net.iw1, net.ig1, net.ibe1, net.iw2, net.ig2, net.ibe2,
               net.iw3, net.ib3, "l2norm")
    z_j = proj(h_j, net.iw1, net.ig1, net.ibe1, net.iw2, net.ig2, net.ibe2,
               net.iw3, net.ib3, "l2norm")
    c_i = proj(h_i, net.cw1, net.cg1, net.cbe1, net.cw2, net.cg2, net.cbe2,
               net.cw3, net.cb3, "softmax")
    c_j = proj(h_j, net.cw1, net.cg1, net.cbe1, net.cw2, net.cg2, net.cbe2,
               net.cw3, net.cb3, "softmax")
    return z_i, z_j, c_i, c_j


# ------------------------------------ main ------------------------------------

if __name__ == "__main__":
    key = jax.random.PRNGKey(0)
    k_param, k_xi, k_xj = jax.random.split(key, 3)

    B, C, L = 8, 4, 16          # batch, channels, seq-len  (x is NCL)
    stcc_dim = 8                # h has stcc_dim*8 = 64 features, mid_dim = 32
    feature_dim = 16
    class_num = 10

    net = NetworkSTCCPallas(k_param, in_features=C * L, stcc_dim=stcc_dim,
                            feature_dim=feature_dim, class_num=class_num)

    x_i = jax.random.normal(k_xi, (B, C, L), jnp.float32)
    x_j = jax.random.normal(k_xj, (B, C, L), jnp.float32)

    z_i, z_j, c_i, c_j = net.forward(x_i, x_j)
    jax.block_until_ready((z_i, z_j, c_i, c_j))

    # sanity check against the un-fused pure-JAX reference (same bf16-matmul /
    # f32-accumulation numerics)
    rz_i, rz_j, rc_i, rc_j = _ref_forward(net, x_i, x_j)
    for got, ref in ((z_i, rz_i), (z_j, rz_j), (c_i, rc_i), (c_j, rc_j)):
        assert jnp.allclose(got, ref, atol=2e-3, rtol=5e-3), \
            "mismatch vs reference"

    assert z_i.shape == (B, feature_dim) and z_j.shape == (B, feature_dim)
    assert c_i.shape == (B, class_num) and c_j.shape == (B, class_num)
    # softmax rows should sum to ~1 (exact reciprocal used)
    assert jnp.allclose(jnp.sum(c_i, axis=1), 1.0, atol=1e-5)
    print("KERNEL_OK")
</pallas_src>

<mosaic_0001>
module attributes {stable_mosaic.version = 11 : i64} {
  func.func @fused_forward_kernel(%arg0: memref<8x64xf32, #tpu.memory_space<vmem>>, %arg1: memref<8x64xf32, #tpu.memory_space<vmem>>, %arg2: memref<64x64xbf16, #tpu.memory_space<vmem>>, %arg3: memref<64x64xbf16, #tpu.memory_space<vmem>>, %arg4: memref<64x64xbf16, #tpu.memory_space<vmem>>, %arg5: memref<64x128xbf16, #tpu.memory_space<vmem>>, %arg6: memref<8x128xf32, #tpu.memory_space<vmem>>, %arg7: memref<16x128xf32, #tpu.memory_space<vmem>>) attributes {dimension_semantics = [], scalar_prefetch = 0 : i64, scratch_operands = 0 : i64, tpu.core_type = #tpu.core_type<tc>} {
    %c0 = arith.constant 0 : index
    %c0_0 = arith.constant 0 : index
    %0 = vector.load %arg0[%c0, %c0_0] : memref<8x64xf32, #tpu.memory_space<vmem>>, vector<8x64xf32>
    %c0_1 = arith.constant 0 : index
    %c0_2 = arith.constant 0 : index
    %1 = vector.load %arg1[%c0_1, %c0_2] : memref<8x64xf32, #tpu.memory_space<vmem>>, vector<8x64xf32>
    %2 = tpu.concatenate %0, %1 in 0 : vector<8x64xf32>, vector<8x64xf32> -> vector<16x64xf32>
    %3 = arith.truncf %2 : vector<16x64xf32> to vector<16x64xbf16>
    %c0_3 = arith.constant 0 : index
    %c0_4 = arith.constant 0 : index
    %4 = vector.load %arg6[%c0_3, %c0_4] : memref<8x128xf32, #tpu.memory_space<vmem>>, vector<1x64xf32>
    %c1 = arith.constant 1 : index
    %c0_5 = arith.constant 0 : index
    %5 = vector.load %arg6[%c1, %c0_5] : memref<8x128xf32, #tpu.memory_space<vmem>>, vector<1x64xf32>
    %c2 = arith.constant 2 : index
    %c0_6 = arith.constant 0 : index
    %6 = vector.load %arg6[%c2, %c0_6] : memref<8x128xf32, #tpu.memory_space<vmem>>, vector<1x64xf32>
    %c3 = arith.constant 3 : index
    %c0_7 = arith.constant 0 : index
    %7 = vector.load %arg6[%c3, %c0_7] : memref<8x128xf32, #tpu.memory_space<vmem>>, vector<1x64xf32>
    %c4 = arith.constant 4 : index
    %c0_8 = arith.constant 0 : index
    %8 = vector.load %arg6[%c4, %c0_8] : memref<8x128xf32, #tpu.memory_space<vmem>>, vector<1x64xf32>
    %c5 = arith.constant 5 : index
    %c0_9 = arith.constant 0 : index
    %9 = vector.load %arg6[%c5, %c0_9] : memref<8x128xf32, #tpu.memory_space<vmem>>, vector<1x128xf32>
    %c0_10 = arith.constant 0 : index
    %c0_11 = arith.constant 0 : index
    %10 = vector.load %arg2[%c0_10, %c0_11] : memref<64x64xbf16, #tpu.memory_space<vmem>>, vector<64x64xbf16>
    %cst = arith.constant dense<0.000000e+00> : vector<16x64xf32>
    %11 = tpu.matmul %3, %10, %cst {dimension_numbers = #tpu.dot_dimension_numbers<[1], [0], [0], [1], [0, 0, 1, 1], [], []>} : vector<16x64xbf16>, vector<64x64xbf16>, vector<16x64xf32> -> vector<16x64xf32>
    %12 = vector.broadcast %4 : vector<1x64xf32> to vector<16x64xf32>
    %13 = arith.addf %11, %12 : vector<16x64xf32>
    %cst_12 = arith.constant 0.000000e+00 : f32
    %14 = vector.broadcast %cst_12 : f32 to vector<16x64xf32>
    %15 = arith.maximumf %13, %14 : vector<16x64xf32>
    %16 = arith.truncf %15 : vector<16x64xf32> to vector<16x64xbf16>
    %c0_13 = arith.constant 0 : index
    %c0_14 = arith.constant 0 : index
    %17 = vector.load %arg3[%c0_13, %c0_14] : memref<64x64xbf16, #tpu.memory_space<vmem>>, vector<64x64xbf16>
    %cst_15 = arith.constant dense<0.000000e+00> : vector<16x64xf32>
    %18 = tpu.matmul %16, %17, %cst_15 {dimension_numbers = #tpu.dot_dimension_numbers<[1], [0], [0], [1], [0, 0, 1, 1], [], []>} : vector<16x64xbf16>, vector<64x64xbf16>, vector<16x64xf32> -> vector<16x64xf32>
    %19 = vector.shape_cast %18 : vector<16x64xf32> to vector<2x8x64xf32>
    %cst_16 = arith.constant dense<0.000000e+00> : vector<2x64xf32>
    %20 = vector.multi_reduction <add>, %19, %cst_16 [1] : vector<2x8x64xf32> to vector<2x64xf32>
    %21 = vector.shape_cast %20 : vector<2x64xf32> to vector<2x1x64xf32>
    %cst_17 = arith.constant 8.000000e+00 : f32
    %22 = vector.broadcast %cst_17 : f32 to vector<2x1x64xf32>
    %23 = arith.divf %21, %22 : vector<2x1x64xf32>
    %24 = vector.broadcast %23 : vector<2x1x64xf32> to vector<2x8x64xf32>
    %25 = arith.subf %19, %24 : vector<2x8x64xf32>
    %26 = arith.mulf %25, %25 : vector<2x8x64xf32>
    %cst_18 = arith.constant dense<0.000000e+00> : vector<2x64xf32>
    %27 = vector.multi_reduction <add>, %26, %cst_18 [1] : vector<2x8x64xf32> to vector<2x64xf32>
    %28 = vector.shape_cast %27 : vector<2x64xf32> to vector<2x1x64xf32>
    %cst_19 = arith.constant 8.000000e+00 : f32
    %29 = vector.broadcast %cst_19 : f32 to vector<2x1x64xf32>
    %30 = arith.divf %28, %29 : vector<2x1x64xf32>
    %31 = vector.broadcast %23 : vector<2x1x64xf32> to vector<2x8x64xf32>
    %32 = arith.subf %19, %31 : vector<2x8x64xf32>
    %cst_20 = arith.constant 9.99999974E-6 : f32
    %33 = vector.broadcast %cst_20 : f32 to vector<2x1x64xf32>
    %34 = arith.addf %30, %33 : vector<2x1x64xf32>
    %35 = math.rsqrt %34 : vector<2x1x64xf32>
    %36 = vector.broadcast %35 : vector<2x1x64xf32> to vector<2x8x64xf32>
    %37 = arith.mulf %32, %36 : vector<2x8x64xf32>
    %38 = vector.shape_cast %37 : vector<2x8x64xf32> to vector<16x64xf32>
    %39 = vector.broadcast %5 : vector<1x64xf32> to vector<16x64xf32>
    %40 = arith.mulf %38, %39 : vector<16x64xf32>
    %41 = vector.broadcast %6 : vector<1x64xf32> to vector<16x64xf32>
    %42 = arith.addf %40, %41 : vector<16x64xf32>
    %cst_21 = arith.constant 0.000000e+00 : f32
    %43 = vector.broadcast %cst_21 : f32 to vector<16x64xf32>
    %44 = arith.maximumf %42, %43 : vector<16x64xf32>
    %45 = arith.truncf %44 : vector<16x64xf32> to vector<16x64xbf16>
    %c0_22 = arith.constant 0 : index
    %c0_23 = arith.constant 0 : index
    %46 = vector.load %arg4[%c0_22, %c0_23] : memref<64x64xbf16, #tpu.memory_space<vmem>>, vector<64x64xbf16>
    %cst_24 = arith.constant dense<0.000000e+00> : vector<16x64xf32>
    %47 = tpu.matmul %45, %46, %cst_24 {dimension_numbers = #tpu.dot_dimension_numbers<[1], [0], [0], [1], [0, 0, 1, 1], [], []>} : vector<16x64xbf16>, vector<64x64xbf16>, vector<16x64xf32> -> vector<16x64xf32>
    %48 = vector.shape_cast %47 : vector<16x64xf32> to vector<2x8x64xf32>
    %cst_25 = arith.constant dense<0.000000e+00> : vector<2x64xf32>
    %49 = vector.multi_reduction <add>, %48, %cst_25 [1] : vector<2x8x64xf32> to vector<2x64xf32>
    %50 = vector.shape_cast %49 : vector<2x64xf32> to vector<2x1x64xf32>
    %cst_26 = arith.constant 8.000000e+00 : f32
    %51 = vector.broadcast %cst_26 : f32 to vector<2x1x64xf32>
    %52 = arith.divf %50, %51 : vector<2x1x64xf32>
    %53 = vector.broadcast %52 : vector<2x1x64xf32> to vector<2x8x64xf32>
    %54 = arith.subf %48, %53 : vector<2x8x64xf32>
    %55 = arith.mulf %54, %54 : vector<2x8x64xf32>
    %cst_27 = arith.constant dense<0.000000e+00> : vector<2x64xf32>
    %56 = vector.multi_reduction <add>, %55, %cst_27 [1] : vector<2x8x64xf32> to vector<2x64xf32>
    %57 = vector.shape_cast %56 : vector<2x64xf32> to vector<2x1x64xf32>
    %cst_28 = arith.constant 8.000000e+00 : f32
    %58 = vector.broadcast %cst_28 : f32 to vector<2x1x64xf32>
    %59 = arith.divf %57, %58 : vector<2x1x64xf32>
    %60 = vector.broadcast %52 : vector<2x1x64xf32> to vector<2x8x64xf32>
    %61 = arith.subf %48, %60 : vector<2x8x64xf32>
    %cst_29 = arith.constant 9.99999974E-6 : f32
    %62 = vector.broadcast %cst_29 : f32 to vector<2x1x64xf32>
    %63 = arith.addf %59, %62 : vector<2x1x64xf32>
    %64 = math.rsqrt %63 : vector<2x1x64xf32>
    %65 = vector.broadcast %64 : vector<2x1x64xf32> to vector<2x8x64xf32>
    %66 = arith.mulf %61, %65 : vector<2x8x64xf32>
    %67 = vector.shape_cast %66 : vector<2x8x64xf32> to vector<16x64xf32>
    %68 = vector.broadcast %7 : vector<1x64xf32> to vector<16x64xf32>
    %69 = arith.mulf %67, %68 : vector<16x64xf32>
    %70 = vector.broadcast %8 : vector<1x64xf32> to vector<16x64xf32>
    %71 = arith.addf %69, %70 : vector<16x64xf32>
    %cst_30 = arith.constant 0.000000e+00 : f32
    %72 = vector.broadcast %cst_30 : f32 to vector<16x64xf32>
    %73 = arith.maximumf %71, %72 : vector<16x64xf32>
    %74 = arith.truncf %73 : vector<16x64xf32> to vector<16x64xbf16>
    %c0_31 = arith.constant 0 : index
    %c0_32 = arith.constant 0 : index
    %75 = vector.load %arg5[%c0_31, %c0_32] : memref<64x128xbf16, #tpu.memory_space<vmem>>, vector<64x128xbf16>
    %cst_33 = arith.constant dense<0.000000e+00> : vector<16x128xf32>
    %76 = tpu.matmul %74, %75, %cst_33 {dimension_numbers = #tpu.dot_dimension_numbers<[1], [0], [0], [1], [0, 0, 1, 1], [], []>} : vector<16x64xbf16>, vector<64x128xbf16>, vector<16x128xf32> -> vector<16x128xf32>
    %77 = vector.broadcast %9 : vector<1x128xf32> to vector<16x128xf32>
    %78 = arith.addf %76, %77 : vector<16x128xf32>
    %79 = tpu.iota {dimensions = array<i32: 1>} : vector<16x128xi32>
    %c16_i32 = arith.constant 16 : i32
    %80 = vector.broadcast %c16_i32 : i32 to vector<16x128xi32>
    %81 = arith.cmpi slt, %79, %80 : vector<16x128xi32>
    %c16_i32_34 = arith.constant 16 : i32
    %82 = vector.broadcast %c16_i32_34 : i32 to vector<16x128xi32>
    %83 = arith.cmpi sge, %79, %82 : vector<16x128xi32>
    %c26_i32 = arith.constant 26 : i32
    %84 = vector.broadcast %c26_i32 : i32 to vector<16x128xi32>
    %85 = arith.cmpi slt, %79, %84 : vector<16x128xi32>
    %86 = arith.andi %83, %85 : vector<16x128xi1>
    %87 = arith.mulf %78, %78 : vector<16x128xf32>
    %cst_35 = arith.constant 0.000000e+00 : f32
    %88 = vector.broadcast %cst_35 : f32 to vector<16x128xf32>
    %89 = arith.select %81, %87, %88 : vector<16x128xi1>, vector<16x128xf32>
    %cst_36 = arith.constant dense<0.000000e+00> : vector<16xf32>
    %90 = vector.multi_reduction <add>, %89, %cst_36 [1] : vector<16x128xf32> to vector<16xf32>
    %91 = vector.shape_cast %90 : vector<16xf32> to vector<16x1xf32>
    %cst_37 = arith.constant 1.000000e-24 : f32
    %92 = vector.broadcast %cst_37 : f32 to vector<16x1xf32>
    %93 = arith.maximumf %91, %92 : vector<16x1xf32>
    %94 = math.rsqrt %93 : vector<16x1xf32>
    %cst_38 = arith.constant 0xFF800000 : f32
    %95 = vector.broadcast %cst_38 : f32 to vector<16x128xf32>
    %96 = arith.select %86, %78, %95 : vector<16x128xi1>, vector<16x128xf32>
    %cst_39 = arith.constant dense<0xFF800000> : vector<16xf32>
    %97 = vector.multi_reduction <maximumf>, %96, %cst_39 [1] : vector<16x128xf32> to vector<16xf32>
    %98 = vector.shape_cast %97 : vector<16xf32> to vector<16x1xf32>
    %99 = vector.broadcast %98 : vector<16x1xf32> to vector<16x128xf32>
    %100 = arith.subf %78, %99 : vector<16x128xf32>
    %101 = math.exp %100 : vector<16x128xf32>
    %cst_40 = arith.constant 0.000000e+00 : f32
    %102 = vector.broadcast %cst_40 : f32 to vector<16x128xf32>
    %103 = arith.select %86, %101, %102 : vector<16x128xi1>, vector<16x128xf32>
    %cst_41 = arith.constant dense<0.000000e+00> : vector<16xf32>
    %104 = vector.multi_reduction <add>, %103, %cst_41 [1] : vector<16x128xf32> to vector<16xf32>
    %105 = vector.shape_cast %104 : vector<16xf32> to vector<16x1xf32>
    %106 = tpu.reciprocal %105 : vector<16x1xf32> -> vector<16x1xf32>
    %107 = vector.broadcast %94 : vector<16x1xf32> to vector<16x128xf32>
    %108 = arith.mulf %78, %107 : vector<16x128xf32>
    %109 = vector.broadcast %106 : vector<16x1xf32> to vector<16x128xf32>
    %110 = arith.mulf %103, %109 : vector<16x128xf32>
    %111 = arith.select %81, %108, %110 : vector<16x128xi1>, vector<16x128xf32>
    %c0_42 = arith.constant 0 : index
    %c0_43 = arith.constant 0 : index
    %112 = vector.load %arg7[%c0_42, %c0_43] : memref<16x128xf32, #tpu.memory_space<vmem>>, vector<16x128xf32>
    tpu.vector_store %arg7[%c0_42, %c0_43], %111 {strides = array<i32>} : memref<16x128xf32, #tpu.memory_space<vmem>>, vector<16x128xf32>,
    return
  }
}

</mosaic_0001>

<llo_original>
// kernel: _forward_jit.1
$region0: #{_forward_jit.1}
  #allocation0 [shape = 'u32[]', space=smem, size = 0x4, offset = 0x4, fixed_abs, tag = 'smem constant byte address 0x4 - core index']
  #allocation1 [shape = 'u32[144,128]{1,0:T(1,128)}', space=vmem, size = 0x12000, scoped, tag = 'internal scratch']
  %s0 = inlined_call_operand.vmem [shape: f32[8,64], index: 0, kind: input, shape index: {}]
  %s1 = inlined_call_operand.vmem [shape: f32[8,64], index: 1, kind: input, shape index: {}]
  %s2 = inlined_call_operand.vmem [shape: bf16[64,64], index: 2, kind: input, shape index: {}]
  %s3 = inlined_call_operand.hbm [shape: bf16[64,64], index: 3, kind: input, shape index: {}]
  %s4 = inlined_call_operand.hbm [shape: bf16[64,64], index: 4, kind: input, shape index: {}]
  %s5 = inlined_call_operand.hbm [shape: bf16[64,128], index: 5, kind: input, shape index: {}]
  %s6 = inlined_call_operand.vmem [shape: f32[8,128], index: 6, kind: input, shape index: {}]
  %s7 = inlined_call_operand.vmem [shape: f32[16,128], index: 7, kind: output, shape index: {}]
  %s8 = sld [smem:[#allocation0]]
  $region50: #{_forward_jit.1} parent=0
    _
  %s10 = ssub.s32 1, %s8
  %s11 = scalar_select 0, %s10, %s8
  $region1: #{_forward_jit.1} parent=0
    #allocation2 [shape = 'u8[16384]{0}', space=vmem, size = 0x4000, scoped, tag = 'input window, operand 3, single buffered']
    #allocation3 [shape = 's32[1]{0}', space=sflag, size = 0x4, scoped, tag = 'scoped memory for _forward_jit.1']
    #allocation4 [shape = 'u8[16384]{0}', space=vmem, size = 0x4000, scoped, tag = 'input window, operand 4, single buffered']
    #allocation5 [shape = 's32[1]{0}', space=sflag, size = 0x4, scoped, tag = 'scoped memory for _forward_jit.1']
    #allocation6 [shape = 'u8[16384]{0}', space=vmem, size = 0x4000, scoped, tag = 'input window, operand 5, single buffered']
    %12 = vsyncpa [#allocation3], 0
    %13 = vsyncpa [#allocation5], 0
    // Predicated region
    $region2: #{_forward_jit.1} parent=1 // pred_check
      _
    $region3: #{_forward_jit.1} parent=1 // pred_check_branch
      %15 = sbr.rel (0) target = $region5
    $region4: #{_forward_jit.1} parent=1 // pred_region
      _
    $region5: #{_forward_jit.1} parent=1 // pred_fallthru
      _
    // Predicated region
    $region6: #{_forward_jit.1} parent=1 // pred_check
      _
    $region7: #{_forward_jit.1} parent=1 // pred_check_branch
      %17 = sbr.rel (0) target = $region9
    $region8: #{_forward_jit.1} parent=1 // pred_region
      _
    $region9: #{_forward_jit.1} parent=1 // pred_fallthru
      _
    // Predicated region
    $region10: #{_forward_jit.1} parent=1 // pred_check
      _
    $region11: #{_forward_jit.1} parent=1 // pred_check_branch
      %19 = sbr.rel (0) target = $region13
    $region12: #{_forward_jit.1} parent=1 // pred_region
      _
    $region13: #{_forward_jit.1} parent=1 // pred_fallthru
      _
    // Predicated region
    $region14: #{_forward_jit.1} parent=1 // pred_check
      _
    $region15: #{_forward_jit.1} parent=1 // pred_check_branch
      %21 = sbr.rel (0) target = $region17
    $region16: #{_forward_jit.1} parent=1 // pred_region
      %s23 = ssub.s32 512, 512
      %24 = vsyncadd [#allocation3], %s23
      %s25 = sshll.u32 [#allocation2], 4
      %s26 = int_to_ptr.vmem [resolvable:$true] %s25
      %31 = dma.hbm_to_vmem [thread:$0]  %s3, 512, %s26, [#allocation3], 64, 64, 4
    $region17: #{_forward_jit.1} parent=1 // pred_fallthru
      _
    // Predicated region
    $region18: #{_forward_jit.1} parent=1 // pred_check
      _
    $region19: #{_forward_jit.1} parent=1 // pred_check_branch
      %33 = sbr.rel (0) target = $region21
    $region20: #{_forward_jit.1} parent=1 // pred_region
      %s35 = ssub.s32 512, 512
      %36 = vsyncadd [#allocation5], %s35
      %s37 = sshll.u32 [#allocation4], 4
      %s38 = int_to_ptr.vmem [resolvable:$true] %s37
      %43 = dma.hbm_to_vmem [thread:$0]  %s4, 512, %s38, [#allocation5], 64, 64, 4
    $region21: #{_forward_jit.1} parent=1 // pred_fallthru
      _
    // Predicated region
    $region22: #{_forward_jit.1} parent=1 // pred_check
      _
    $region23: #{_forward_jit.1} parent=1 // pred_check_branch
      %45 = sbr.rel (0) target = $region25
    $region24: #{_forward_jit.1} parent=1 // pred_region
      %s47 = ssub.s32 512, 512
      %48 = vsyncadd [#allocation5], %s47
      %s49 = sshll.u32 [#allocation6], 4
      %s50 = int_to_ptr.vmem [resolvable:$true] %s49
      %55 = dma.hbm_to_vmem [thread:$0]  %s5, 512, %s50, [#allocation5], 64, 64, 4
    $region25: #{_forward_jit.1} parent=1 // pred_fallthru
      _
    // Predicated region
    $region26: #{_forward_jit.1} parent=1 // pred_check
      _
    $region27: #{_forward_jit.1} parent=1 // pred_check_branch
      %57 = sbr.rel (0) target = $region29
    $region28: #{_forward_jit.1} parent=1 // pred_region
      _
    $region29: #{_forward_jit.1} parent=1 // pred_fallthru
      _
    // Predicated region
    $region30: #{_forward_jit.1} parent=1 // pred_check
      _
    $region31: #{_forward_jit.1} parent=1 // pred_check_branch
      %59 = sbr.rel (0) target = $region33
    $region32: #{_forward_jit.1} parent=1 // pred_region
      %60 = dma.done [#allocation3], 512
    $region33: #{_forward_jit.1} parent=1 // pred_fallthru
      _
    // Predicated region
    $region34: #{_forward_jit.1} parent=1 // pred_check
      _
    $region35: #{_forward_jit.1} parent=1 // pred_check_branch
      %62 = sbr.rel (0) target = $region37
    $region36: #{_forward_jit.1} parent=1 // pred_region
      %63 = dma.done [#allocation5], 512
    $region37: #{_forward_jit.1} parent=1 // pred_fallthru
      _
    // Predicated region
    $region38: #{_forward_jit.1} parent=1 // pred_check
      _
    $region39: #{_forward_jit.1} parent=1 // pred_check_branch
      %65 = sbr.rel (0) target = $region41
    $region40: #{_forward_jit.1} parent=1 // pred_region
      %66 = dma.done [#allocation5], 512
    $region41: #{_forward_jit.1} parent=1 // pred_fallthru
      _
    %v68 = vld [vmem:[%s0] sm:$0xff]
    %v69 = vld [vmem:[%s1] sm:$0xff]
    %v70 = vpack.c.bf16 %v69, %v68
    %v71 = vld [vmem:[%s6] sm:$0x1]
    %v72 = vld [vmem:[%s6 + $0x1] sm:$0x1]
    %v73 = vld [vmem:[%s6 + $0x2] sm:$0x1]
    %v74 = vld [vmem:[%s6 + $0x3] sm:$0x1]
    %v75 = vld [vmem:[%s6 + $0x4] sm:$0x1]
    %v76 = vld [vmem:[%s6 + $0x5] sm:$0x1]
    %v77 = vld [vmem:[%s2] sm:$0xf]
    %v78 = vld [vmem:[%s2 + $0x4] sm:$0xf]
    %v79 = vld [vmem:[%s2 + $0x8] sm:$0xf]
    %v80 = vld [vmem:[%s2 + $0xc] sm:$0xf]
    %v81 = vld [vmem:[%s2 + $0x10] sm:$0xf]
    %v82 = vld [vmem:[%s2 + $0x14] sm:$0xf]
    %v83 = vld [vmem:[%s2 + $0x18] sm:$0xf]
    %v84 = vld [vmem:[%s2 + $0x1c] sm:$0xf]
    %v85 = vlaneseq
    %v86 = vshrl.u32 %v85, 7
    %v87 = vsub.s32 0, %v86
    %v88 = vrot.slane %v71, %v87
    %v97 = vunpack.c.l.b16 %v77
    %v98 = vunpack.c.l.b16 %v78
    %v99 = vunpack.c.l.b16 %v79
    %v100 = vunpack.c.l.b16 %v80
    %v101 = vunpack.c.l.b16 %v81
    %v102 = vunpack.c.l.b16 %v82
    %v103 = vunpack.c.l.b16 %v83
    %v104 = vunpack.c.l.b16 %v84
    %v105 = vpack.c.b16 %v98, %v97
    %v106 = vpack.c.b16 %v100, %v99
    %v107 = vpack.c.b16 %v102, %v101
    %v108 = vpack.c.b16 %v104, %v103
    %vm113 = vcmask 523264
    %v115 = vsel %vm113, %v70, 0
    %117 = vmatprep.subr.bf16.mxu0 0
    %118 = vmatpush1.bf16.msra.mxu0 0
    %119 = vmatprep.subr.bf16.mxu0 0
    %120 = vmatpush1.bf16.msra.mxu0 0
    %121 = vmatprep.subr.bf16.mxu0 0
    %122 = vmatpush1.bf16.msra.mxu0 0
    %123 = vmatprep.subr.bf16.mxu0 0
    %124 = vmatpush1.bf16.msra.mxu0 0
    %125 = vmatprep.subr.bf16.mxu0 0
    %126 = vmatpush1.bf16.msra.mxu0 %v108
    %127 = vmatprep.subr.bf16.mxu0 0
    %128 = vmatpush1.bf16.msra.mxu0 %v107
    %129 = vmatprep.subr.bf16.mxu0 0
    %130 = vmatpush1.bf16.msra.mxu0 %v106
    %131 = vmatprep.subr.bf16.mxu0 0
    %132 = vmatpush1.bf16.msra.mxu0 %v105
    %133 = vmatprep.subr.bf16.mxu0 0
    %134 = vmatpush2.bf16.msra.mxu0 0
    %135 = vmatprep.subr.bf16.mxu0 0
    %136 = vmatpush2.bf16.msra.mxu0 0
    %137 = vmatprep.subr.bf16.mxu0 0
    %138 = vmatpush2.bf16.msra.mxu0 0
    %139 = vmatprep.subr.bf16.mxu0 0
    %140 = vmatpush2.bf16.msra.mxu0 0
    %141 = vmatprep.subr.bf16.mxu0 0
    %142 = vmatpush2.bf16.msra.mxu0 0
    %143 = vmatprep.subr.bf16.mxu0 0
    %144 = vmatpush2.bf16.msra.mxu0 0
    %145 = vmatprep.subr.bf16.mxu0 0
    %146 = vmatpush2.bf16.msra.mxu0 0
    %147 = vmatprep.subr.bf16.mxu0 0
    %148 = vmatpush2.bf16.msra.mxu0 0
    %149 = vmatprep.mubr.bf16.mxu0 0
    %150 = vmatmul.mubr.bf16.gmra.mxu0 %v115
    %v151 = vpop.f32.mrf.mxu0
    %v152 = vadd.f32 %v88, %v151
    %v153 = vpop.f32.mrf.mxu0
    %v154 = vpop.f32.mrf.mxu0
    %v155 = vadd.f32 %v88, %v154
    %v156 = vpop.f32.mrf.mxu0
    %157 = vdwg.mxu0
    %v158 = vmax.f32 %v152, 0.0
    %v159 = vmax.f32 %v155, 0.0
    %v160 = vpack.c.bf16 %v159, %v158
    %v161 = vld [vmem:[#allocation2] sm:$0xf]
    %v162 = vld [vmem:[#allocation2 + $0x4] sm:$0xf]
    %v163 = vld [vmem:[#allocation2 + $0x8] sm:$0xf]
    %v164 = vld [vmem:[#allocation2 + $0xc] sm:$0xf]
    %v165 = vld [vmem:[#allocation2 + $0x10] sm:$0xf]
    %v166 = vld [vmem:[#allocation2 + $0x14] sm:$0xf]
    %v167 = vld [vmem:[#allocation2 + $0x18] sm:$0xf]
    %v168 = vld [vmem:[#allocation2 + $0x1c] sm:$0xf]
    %v177 = vunpack.c.l.b16 %v161
    %v178 = vunpack.c.l.b16 %v162
    %v179 = vunpack.c.l.b16 %v163
    %v180 = vunpack.c.l.b16 %v164
    %v181 = vunpack.c.l.b16 %v165
    %v182 = vunpack.c.l.b16 %v166
    %v183 = vunpack.c.l.b16 %v167
    %v184 = vunpack.c.l.b16 %v168
    %v185 = vpack.c.b16 %v178, %v177
    %v186 = vpack.c.b16 %v180, %v179
    %v187 = vpack.c.b16 %v182, %v181
    %v188 = vpack.c.b16 %v184, %v183
    %v194 = vsel %vm113, %v160, 0
    %196 = vmatprep.subr.bf16.mxu0 0
    %197 = vmatpush1.bf16.msra.mxu0 0
    %198 = vmatprep.subr.bf16.mxu0 0
    %199 = vmatpush1.bf16.msra.mxu0 0
    %200 = vmatprep.subr.bf16.mxu0 0
    %201 = vmatpush1.bf16.msra.mxu0 0
    %202 = vmatprep.subr.bf16.mxu0 0
    %203 = vmatpush1.bf16.msra.mxu0 0
    %204 = vmatprep.subr.bf16.mxu0 0
    %205 = vmatpush1.bf16.msra.mxu0 %v188
    %206 = vmatprep.subr.bf16.mxu0 0
    %207 = vmatpush1.bf16.msra.mxu0 %v187
    %208 = vmatprep.subr.bf16.mxu0 0
    %209 = vmatpush1.bf16.msra.mxu0 %v186
    %210 = vmatprep.subr.bf16.mxu0 0
    %211 = vmatpush1.bf16.msra.mxu0 %v185
    %212 = vmatprep.subr.bf16.mxu0 0
    %213 = vmatpush2.bf16.msra.mxu0 0
    %214 = vmatprep.subr.bf16.mxu0 0
    %215 = vmatpush2.bf16.msra.mxu0 0
    %216 = vmatprep.subr.bf16.mxu0 0
    %217 = vmatpush2.bf16.msra.mxu0 0
    %218 = vmatprep.subr.bf16.mxu0 0
    %219 = vmatpush2.bf16.msra.mxu0 0
    %220 = vmatprep.subr.bf16.mxu0 0
    %221 = vmatpush2.bf16.msra.mxu0 0
    %222 = vmatprep.subr.bf16.mxu0 0
    %223 = vmatpush2.bf16.msra.mxu0 0
    %224 = vmatprep.subr.bf16.mxu0 0
    %225 = vmatpush2.bf16.msra.mxu0 0
    %226 = vmatprep.subr.bf16.mxu0 0
    %227 = vmatpush2.bf16.msra.mxu0 0
    %228 = vmatprep.mubr.bf16.mxu0 0
    %229 = vmatmul.mubr.bf16.gmra.mxu0 %v194
    %v230 = vpop.f32.mrf.mxu0
    %v231 = vadd.f32 0.0, %v230
    %v232 = vpop.f32.mrf.mxu0
    %v233 = vpop.f32.mrf.mxu0
    %v234 = vadd.f32 0.0, %v233
    %v235 = vpop.f32.mrf.mxu0
    %236 = vdwg.mxu0
    %v237 = vsel %vm113, %v231, 0.0
    %v238 = vrot.slane %v237, 4
    %v239 = vadd.f32 %v237, %v238
    %v240 = vrot.slane %v239, 2
    %v241 = vadd.f32 %v239, %v240
    %v242 = vrot.slane %v241, 1
    %v243 = vadd.f32 %v241, %v242
    %v244 = vsel %vm113, %v234, 0.0
    %v245 = vrot.slane %v244, 4
    %v246 = vadd.f32 %v244, %v245
    %v247 = vrot.slane %v246, 2
    %v248 = vadd.f32 %v246, %v247
    %v249 = vrot.slane %v248, 1
    %v250 = vadd.f32 %v248, %v249
    %v251 = vrcp.pop 8.0
    %v252 = vmul.f32 %v243, %v251
    %v253 = vmul.f32 %v250, %v251
    %v254 = vsub.f32 %v231, %v252
    %v255 = vsub.f32 %v234, %v253
    %v256 = vmul.f32 %v254, %v254
    %v257 = vmul.f32 %v255, %v255
    %v258 = vsel %vm113, %v256, 0.0
    %v259 = vrot.slane %v258, 4
    %v260 = vadd.f32 %v258, %v259
    %v261 = vrot.slane %v260, 2
    %v262 = vadd.f32 %v260, %v261
    %v263 = vrot.slane %v262, 1
    %v264 = vadd.f32 %v262, %v263
    %v265 = vsel %vm113, %v257, 0.0
    %v266 = vrot.slane %v265, 4
    %v267 = vadd.f32 %v265, %v266
    %v268 = vrot.slane %v267, 2
    %v269 = vadd.f32 %v267, %v268
    %v270 = vrot.slane %v269, 1
    %v271 = vadd.f32 %v269, %v270
    %v272 = vmul.f32 %v264, %v251
    %v273 = vmul.f32 %v271, %v251
    %v274 = vadd.f32 %v272, 1e-05
    %v275 = vadd.f32 %v273, 1e-05
    %v276 = vrsqrt.pop %v274
    %v277 = vrsqrt.pop %v275
    %v278 = vmul.f32 %v254, %v276
    %v279 = vmul.f32 %v255, %v277
    %v280 = vlaneseq
    %v281 = vshrl.u32 %v280, 7
    %v282 = vsub.s32 0, %v281
    %v283 = vrot.slane %v72, %v282
    %v284 = vmul.f32 %v278, %v283
    %v285 = vmul.f32 %v279, %v283
    %v286 = vlaneseq
    %v287 = vshrl.u32 %v286, 7
    %v288 = vsub.s32 0, %v287
    %v289 = vrot.slane %v73, %v288
    %v290 = vadd.f32 %v284, %v289
    %v291 = vadd.f32 %v285, %v289
    %v292 = vmax.f32 %v290, 0.0
    %v293 = vmax.f32 %v291, 0.0
    %v294 = vpack.c.bf16 %v293, %v292
    %v295 = vld [vmem:[#allocation4] sm:$0xf]
    %v296 = vld [vmem:[#allocation4 + $0x4] sm:$0xf]
    %v297 = vld [vmem:[#allocation4 + $0x8] sm:$0xf]
    %v298 = vld [vmem:[#allocation4 + $0xc] sm:$0xf]
    %v299 = vld [vmem:[#allocation4 + $0x10] sm:$0xf]
    %v300 = vld [vmem:[#allocation4 + $0x14] sm:$0xf]
    %v301 = vld [vmem:[#allocation4 + $0x18] sm:$0xf]
    %v302 = vld [vmem:[#allocation4 + $0x1c] sm:$0xf]
    %v311 = vunpack.c.l.b16 %v295
    %v312 = vunpack.c.l.b16 %v296
    %v313 = vunpack.c.l.b16 %v297
    %v314 = vunpack.c.l.b16 %v298
    %v315 = vunpack.c.l.b16 %v299
    %v316 = vunpack.c.l.b16 %v300
    %v317 = vunpack.c.l.b16 %v301
    %v318 = vunpack.c.l.b16 %v302
    %v319 = vpack.c.b16 %v312, %v311
    %v320 = vpack.c.b16 %v314, %v313
    %v321 = vpack.c.b16 %v316, %v315
    %v322 = vpack.c.b16 %v318, %v317
    %v328 = vsel %vm113, %v294, 0
    %330 = vmatprep.subr.bf16.mxu0 0
    %331 = vmatpush1.bf16.msra.mxu0 0
    %332 = vmatprep.subr.bf16.mxu0 0
    %333 = vmatpush1.bf16.msra.mxu0 0
    %334 = vmatprep.subr.bf16.mxu0 0
    %335 = vmatpush1.bf16.msra.mxu0 0
    %336 = vmatprep.subr.bf16.mxu0 0
    %337 = vmatpush1.bf16.msra.mxu0 0
    %338 = vmatprep.subr.bf16.mxu0 0
    %339 = vmatpush1.bf16.msra.mxu0 %v322
    %340 = vmatprep.subr.bf16.mxu0 0
    %341 = vmatpush1.bf16.msra.mxu0 %v321
    %342 = vmatprep.subr.bf16.mxu0 0
    %343 = vmatpush1.bf16.msra.mxu0 %v320
    %344 = vmatprep.subr.bf16.mxu0 0
    %345 = vmatpush1.bf16.msra.mxu0 %v319
    %346 = vmatprep.subr.bf16.mxu0 0
    %347 = vmatpush2.bf16.msra.mxu0 0
    %348 = vmatprep.subr.bf16.mxu0 0
    %349 = vmatpush2.bf16.msra.mxu0 0
    %350 = vmatprep.subr.bf16.mxu0 0
    %351 = vmatpush2.bf16.msra.mxu0 0
    %352 = vmatprep.subr.bf16.mxu0 0
    %353 = vmatpush2.bf16.msra.mxu0 0
    %354 = vmatprep.subr.bf16.mxu0 0
    %355 = vmatpush2.bf16.msra.mxu0 0
    %356 = vmatprep.subr.bf16.mxu0 0
    %357 = vmatpush2.bf16.msra.mxu0 0
    %358 = vmatprep.subr.bf16.mxu0 0
    %359 = vmatpush2.bf16.msra.mxu0 0
    %360 = vmatprep.subr.bf16.mxu0 0
    %361 = vmatpush2.bf16.msra.mxu0 0
    %362 = vmatprep.mubr.bf16.mxu0 0
    %363 = vmatmul.mubr.bf16.gmra.mxu0 %v328
    %v364 = vpop.f32.mrf.mxu0
    %v365 = vadd.f32 0.0, %v364
    %v366 = vpop.f32.mrf.mxu0
    %v367 = vpop.f32.mrf.mxu0
    %v368 = vadd.f32 0.0, %v367
    %v369 = vpop.f32.mrf.mxu0
    %370 = vdwg.mxu0
    %v371 = vsel %vm113, %v365, 0.0
    %v372 = vrot.slane %v371, 4
    %v373 = vadd.f32 %v371, %v372
    %v374 = vrot.slane %v373, 2
    %v375 = vadd.f32 %v373, %v374
    %v376 = vrot.slane %v375, 1
    %v377 = vadd.f32 %v375, %v376
    %v378 = vsel %vm113, %v368, 0.0
    %v379 = vrot.slane %v378, 4
    %v380 = vadd.f32 %v378, %v379
    %v381 = vrot.slane %v380, 2
    %v382 = vadd.f32 %v380, %v381
    %v383 = vrot.slane %v382, 1
    %v384 = vadd.f32 %v382, %v383
    %v385 = vmul.f32 %v377, %v251
    %v386 = vmul.f32 %v384, %v251
    %v387 = vsub.f32 %v365, %v385
    %v388 = vsub.f32 %v368, %v386
    %v389 = vmul.f32 %v387, %v387
    %v390 = vmul.f32 %v388, %v388
    %v391 = vsel %vm113, %v389, 0.0
    %v392 = vrot.slane %v391, 4
    %v393 = vadd.f32 %v391, %v392
    %v394 = vrot.slane %v393, 2
    %v395 = vadd.f32 %v393, %v394
    %v396 = vrot.slane %v395, 1
    %v397 = vadd.f32 %v395, %v396
    %v398 = vsel %vm113, %v390, 0.0
    %v399 = vrot.slane %v398, 4
    %v400 = vadd.f32 %v398, %v399
    %v401 = vrot.slane %v400, 2
    %v402 = vadd.f32 %v400, %v401
    %v403 = vrot.slane %v402, 1
    %v404 = vadd.f32 %v402, %v403
    %v405 = vmul.f32 %v397, %v251
    %v406 = vmul.f32 %v404, %v251
    %v407 = vadd.f32 %v405, 1e-05
    %v408 = vadd.f32 %v406, 1e-05
    %v409 = vrsqrt.pop %v407
    %v410 = vrsqrt.pop %v408
    %v411 = vmul.f32 %v387, %v409
    %v412 = vmul.f32 %v388, %v410
    %v413 = vlaneseq
    %v414 = vshrl.u32 %v413, 7
    %v415 = vsub.s32 0, %v414
    %v416 = vrot.slane %v74, %v415
    %v417 = vmul.f32 %v411, %v416
    %v418 = vmul.f32 %v412, %v416
    %v419 = vlaneseq
    %v420 = vshrl.u32 %v419, 7
    %v421 = vsub.s32 0, %v420
    %v422 = vrot.slane %v75, %v421
    %v423 = vadd.f32 %v417, %v422
    %v424 = vadd.f32 %v418, %v422
    %v425 = vmax.f32 %v423, 0.0
    %v426 = vmax.f32 %v424, 0.0
    %v427 = vpack.c.bf16 %v426, %v425
    %v428 = vld [vmem:[#allocation6] sm:$0xf]
    %v429 = vld [vmem:[#allocation6 + $0x4] sm:$0xf]
    %v430 = vld [vmem:[#allocation6 + $0x8] sm:$0xf]
    %v431 = vld [vmem:[#allocation6 + $0xc] sm:$0xf]
    %v432 = vld [vmem:[#allocation6 + $0x10] sm:$0xf]
    %v433 = vld [vmem:[#allocation6 + $0x14] sm:$0xf]
    %v434 = vld [vmem:[#allocation6 + $0x18] sm:$0xf]
    %v435 = vld [vmem:[#allocation6 + $0x1c] sm:$0xf]
    %v436 = vlaneseq
    %v437 = vshrl.u32 %v436, 7
    %v438 = vsub.s32 0, %v437
    %v439 = vrot.slane %v76, %v438
    %v448 = vunpack.c.l.b16 %v428
    %v449 = vunpack.c.l.b16 %v429
    %v450 = vunpack.c.l.b16 %v430
    %v451 = vunpack.c.l.b16 %v431
    %v452 = vunpack.c.l.b16 %v432
    %v453 = vunpack.c.l.b16 %v433
    %v454 = vunpack.c.l.b16 %v434
    %v455 = vunpack.c.l.b16 %v435
    %v456 = vpack.c.b16 %v449, %v448
    %v457 = vpack.c.b16 %v451, %v450
    %v458 = vpack.c.b16 %v453, %v452
    %v459 = vpack.c.b16 %v455, %v454
    %v465 = vsel %vm113, %v427, 0
    %467 = vmatprep.subr.bf16.mxu0 0
    %468 = vmatpush1.bf16.msra.mxu0 0
    %469 = vmatprep.subr.bf16.mxu0 0
    %470 = vmatpush1.bf16.msra.mxu0 0
    %471 = vmatprep.subr.bf16.mxu0 0
    %472 = vmatpush1.bf16.msra.mxu0 0
    %473 = vmatprep.subr.bf16.mxu0 0
    %474 = vmatpush1.bf16.msra.mxu0 0
    %475 = vmatprep.subr.bf16.mxu0 0
    %476 = vmatpush1.bf16.msra.mxu0 %v459
    %477 = vmatprep.subr.bf16.mxu0 0
    %478 = vmatpush1.bf16.msra.mxu0 %v458
    %479 = vmatprep.subr.bf16.mxu0 0
    %480 = vmatpush1.bf16.msra.mxu0 %v457
    %481 = vmatprep.subr.bf16.mxu0 0
    %482 = vmatpush1.bf16.msra.mxu0 %v456
    %483 = vmatprep.subr.bf16.mxu0 0
    %484 = vmatpush2.bf16.msra.mxu0 0
    %485 = vmatprep.subr.bf16.mxu0 0
    %486 = vmatpush2.bf16.msra.mxu0 0
    %487 = vmatprep.subr.bf16.mxu0 0
    %488 = vmatpush2.bf16.msra.mxu0 0
    %489 = vmatprep.subr.bf16.mxu0 0
    %490 = vmatpush2.bf16.msra.mxu0 0
    %491 = vmatprep.subr.bf16.mxu0 0
    %492 = vmatpush2.bf16.msra.mxu0 0
    %493 = vmatprep.subr.bf16.mxu0 0
    %494 = vmatpush2.bf16.msra.mxu0 0
    %495 = vmatprep.subr.bf16.mxu0 0
    %496 = vmatpush2.bf16.msra.mxu0 0
    %497 = vmatprep.subr.bf16.mxu0 0
    %498 = vmatpush2.bf16.msra.mxu0 0
    %499 = vmatprep.mubr.bf16.mxu0 0
    %500 = vmatmul.mubr.bf16.gmra.mxu0 %v465
    %v501 = vpop.f32.mrf.mxu0
    %v502 = vadd.f32 %v439, %v501
    %v503 = vpop.f32.mrf.mxu0
    %v504 = vpop.f32.mrf.mxu0
    %v505 = vadd.f32 %v439, %v504
    %v506 = vpop.f32.mrf.mxu0
    %507 = vdwg.mxu0
    %v508 = vlaneseq
    %v509 = vand.u32 %v508, 127
    %vm510 = vcmp.lt.s32.totalorder %v509, 16
    %vm511 = vcmp.ge.s32.totalorder %v509, 16
    %vm512 = vcmp.lt.s32.totalorder %v509, 26
    %vm513 = vmand %vm511, %vm512
    %v514 = vmul.f32 %v502, %v502
    %v515 = vmul.f32 %v505, %v505
    %v516 = vsel %vm510, %v514, 0.0
    %v517 = vsel %vm510, %v515, 0.0
    %518 = vadd.xlane.f32.xlu0 %v516
    %v519 = vpop.xlane.xlu0 %518
    %520 = vadd.xlane.f32.xlu0 %v517
    %v521 = vpop.xlane.xlu0 %520
    %v522 = vmax.f32 %v519, 1e-24
    %v523 = vmax.f32 %v521, 1e-24
    %v524 = vrsqrt.pop %v522
    %v525 = vrsqrt.pop %v523
    %v526 = vsel %vm513, %v502, -inf
    %v527 = vsel %vm513, %v505, -inf
    %528 = vmax.xlane.f32.xlu0 %v526
    %v529 = vpop.xlane.xlu0 %528
    %530 = vmax.xlane.f32.xlu0 %v527
    %v531 = vpop.xlane.xlu0 %530
    %v532 = vsub.f32 %v502, %v529
    %v533 = vsub.f32 %v505, %v531
    %v534 = vmul.f32 %v532, 1.442695
    %v535 = vpow.pop %v534
    %v536 = vmul.f32 %v533, 1.442695
    %v537 = vpow.pop %v536
    %v538 = vsel %vm513, %v535, 0.0
    %v539 = vsel %vm513, %v537, 0.0
    %540 = vadd.xlane.f32.xlu0 %v538
    %v541 = vpop.xlane.xlu0 %540
    %542 = vadd.xlane.f32.xlu0 %v539
    %v543 = vpop.xlane.xlu0 %542
    %v544 = vrcp.pop %v541
    %v545 = vrcp.pop %v543
    %v546 = vmul.f32 %v502, %v524
    %v547 = vmul.f32 %v505, %v525
    %v548 = vmul.f32 %v538, %v544
    %v549 = vmul.f32 %v539, %v545
    %v550 = vsel %vm510, %v546, %v548
    %v551 = vsel %vm510, %v547, %v549
    %552 = vst [vmem:[%s7] sm:$0xff] %v550
    %553 = vst [vmem:[%s7 + $0x8] sm:$0xff] %v551
    // Predicated region
    $region42: #{_forward_jit.1} parent=1 // pred_check
      _
    $region43: #{_forward_jit.1} parent=1 // pred_check_branch
      %555 = sbr.rel (0) target = $region45
    $region44: #{_forward_jit.1} parent=1 // pred_region
      _
    $region45: #{_forward_jit.1} parent=1 // pred_fallthru
      _
    // Predicated region
    $region46: #{_forward_jit.1} parent=1 // pred_check
      _
    $region47: #{_forward_jit.1} parent=1 // pred_check_branch
      %557 = sbr.rel (0) target = $region49
    $region48: #{_forward_jit.1} parent=1 // pred_region
      _
    $region49: #{_forward_jit.1} parent=1 // pred_fallthru
      _
    %558 = vsyncpa [#allocation3], 1
    %559 = vsyncpa [#allocation5], 1

</llo_original>
